<compile_context>
chip_gen: v5e
topology: v5e:2x2
jax: 0.10.0
libtpu: 0.0.40
codegen_flags: <defaults>
</compile_context>

<pallas_src>
import functools

import jax
import jax.numpy as jnp
from jax.experimental import pallas as pl
from jax.experimental.pallas import tpu as pltpu


def _sdpa_kernel(q_ref, k_ref, v_ref, out_ref, attn_ref, logattn_ref, *,
                 inv_temperature, transpose_attn):
    q = q_ref[...]          # (TQ, D) or (BT, TQ, D), native dtype
    k = k_ref[...]          # (Lk, D) or (BT, Lk, D)
    v = v_ref[...]          # (Lk, Dv) or (BT, Lk, Dv)
    batched = q.ndim == 3

    # Scores: contraction over D (no explicit K transpose), f32 accumulation on the MXU.
    if batched:
        s = jnp.einsum("bqd,bkd->bqk", q, k, preferred_element_type=jnp.float32)
    else:
        s = jnp.einsum("qd,kd->qk", q, k, preferred_element_type=jnp.float32)

    # Scale on the f32 score tile: keeps bf16 inputs exact on the MXU and avoids a
    # bf16 VPU multiply on v5e.
    s = s * jnp.float32(inv_temperature)

    # Numerically stable softmax / log-softmax along the key axis (torch dim=2).
    m = jnp.max(s, axis=-1, keepdims=True)
    sm = s - m
    e = jnp.exp(sm)
    denom = jnp.sum(e, axis=-1, keepdims=True)
    # approx reciprocal (single EUP vrcp) is free when the stored dtype is <= 16-bit.
    approx = jnp.dtype(attn_ref.dtype).itemsize < 4
    attn = e * pl.reciprocal(denom, approx=approx)
    log_attn = sm - jnp.log(denom)

    # Dropout: identity (eval-mode semantics).
    if batched:
        out = jnp.einsum("bqk,bkd->bqd", attn.astype(v.dtype), v,
                         preferred_element_type=jnp.float32)
    else:
        out = jnp.einsum("qk,kd->qd", attn.astype(v.dtype), v,
                         preferred_element_type=jnp.float32)

    out_ref[...] = out.astype(out_ref.dtype)
    if transpose_attn:
        # Lane-dense store: (.., Lk, TQ) puts TQ (>=128) on the lane axis; the XLU
        # transpose rides a slot that has slack at these shapes.
        attn_ref[...] = jnp.swapaxes(attn, -1, -2).astype(attn_ref.dtype)
        logattn_ref[...] = jnp.swapaxes(log_attn, -1, -2).astype(logattn_ref.dtype)
    else:
        attn_ref[...] = attn.astype(attn_ref.dtype)
        logattn_ref[...] = log_attn.astype(logattn_ref.dtype)


def _tpu_info():
    kind = ""
    try:
        kind = jax.devices()[0].device_kind.lower()
    except Exception:
        pass
    try:
        vmem_cap = int(pltpu.get_tpu_info().vmem_capacity_bytes)
    except Exception:
        vmem_cap = (64 << 20) if "v7" in kind else (128 << 20)
    two_tc = any(t in kind for t in ("v7", "v4", "v5p"))
    return kind, vmem_cap, two_tc


def _choose_tq(Lq, ws_fn, budget):
    """Largest Lq tile whose double-buffered working set fits the VMEM budget."""
    if ws_fn(Lq) <= budget:
        return Lq
    divs8 = [d for d in range(8, Lq, 8) if Lq % d == 0]
    divs128 = [d for d in divs8 if d % 128 == 0]
    for cand in sorted(divs128, reverse=True):   # prefer 128-aligned (MXU / lane-dense)
        if ws_fn(cand) <= budget:
            return cand
    for cand in sorted(divs8, reverse=True):
        if ws_fn(cand) <= budget:
            return cand
    return min(divs8) if divs8 else Lq           # best effort for awkward Lq


def scaled_dot_product_attention(q, k, v, temperature):
    B, Lq, D = q.shape
    Bk, Lk, Dk = k.shape
    Bv, Lv, Dv = v.shape
    assert D == Dk and Bk == B and Bv == B and Lv == Lk

    out_dtype = q.dtype
    in_sz = jnp.dtype(q.dtype).itemsize
    out_sz = jnp.dtype(out_dtype).itemsize

    _, vmem_cap, two_tc = _tpu_info()

    # ~3/8 of physical VMEM for one step's double-buffered working set
    # (24 MiB on v7x, 48 MiB on v5e/v6e), leaving headroom for compiler scratch.
    budget = (vmem_cap * 3) // 8

    def ws(tq, bt=1, kv_bufs=2):
        return (2 * bt * tq * D * in_sz
                + kv_bufs * bt * Lk * (D + Dv) * in_sz
                + 2 * bt * (tq * Dv + 2 * tq * Lk) * out_sz)

    TQ = _choose_tq(Lq, lambda t: ws(t), budget)

    # Batch packing: fold the whole batch (or half of it on 2-TC chips) into one grid
    # step when the working set is small; amortizes the ~600-cycle per-step overhead
    # that dominates at deepbdc-sized problems.
    pack_threshold = (6 << 20) if two_tc else (8 << 20)
    BT = 1
    if TQ == Lq and B > 1 and ws(Lq, bt=B) <= pack_threshold:
        if two_tc:
            BT = B // 2 if B % 2 == 0 else 1    # keep >= 2 parallel steps for 2 TCs
        else:
            BT = B

    num_b_steps = B // BT
    num_q_steps = Lq // TQ
    grid = (num_b_steps, num_q_steps)

    # Lane-dense attn/log_attn layout when Lk is far below the 128-lane width but the
    # q tile is lane-sized; swapped back outside the kernel.
    transpose_attn = (Lk < 128) and (TQ >= 128) and (TQ % 128 == 0 or TQ == Lq)

    # K/V blocks never change when the grid does not iterate over batch; single-buffer
    # them (when big enough to matter) to free VMEM for a larger q tile.
    kv_block_bytes = BT * Lk * (D + Dv) * in_sz
    kv_single = (num_b_steps == 1) and (kv_block_bytes > (512 << 10))
    kv_kwargs = dict(pipeline_mode=pl.Buffered(1)) if kv_single else {}

    # With BT == 1, squeeze the batch dim out of the kernel refs (plain 2-D MXU matmuls).
    lead = None if BT == 1 else BT

    in_specs = [
        pl.BlockSpec((lead, TQ, D), lambda b, i: (b, i, 0)),
        pl.BlockSpec((lead, Lk, D), lambda b, i: (b, 0, 0), **kv_kwargs),
        pl.BlockSpec((lead, Lk, Dv), lambda b, i: (b, 0, 0), **kv_kwargs),
    ]
    out_spec_o = pl.BlockSpec((lead, TQ, Dv), lambda b, i: (b, i, 0))
    if transpose_attn:
        attn_shape = (B, Lk, Lq)
        out_spec_a = pl.BlockSpec((lead, Lk, TQ), lambda b, i: (b, 0, i))
    else:
        attn_shape = (B, Lq, Lk)
        out_spec_a = pl.BlockSpec((lead, TQ, Lk), lambda b, i: (b, i, 0))

    out_shapes = (
        jax.ShapeDtypeStruct((B, Lq, Dv), out_dtype),   # output
        jax.ShapeDtypeStruct(attn_shape, out_dtype),    # attn (maybe transposed)
        jax.ShapeDtypeStruct(attn_shape, out_dtype),    # log_attn (maybe transposed)
    )

    kernel = functools.partial(_sdpa_kernel,
                               inv_temperature=1.0 / float(temperature),
                               transpose_attn=transpose_attn)

    grid_spec = pltpu.PrefetchScalarGridSpec(
        num_scalar_prefetch=0,
        grid=grid,
        in_specs=in_specs,
        out_specs=[out_spec_o, out_spec_a, out_spec_a],
    )

    per_step_vmem = ws(TQ, bt=BT, kv_bufs=1 if kv_single else 2)
    cp_kwargs = dict(dimension_semantics=("parallel", "parallel"))
    if per_step_vmem > (16 << 20):
        # Cap at 75% of physical VMEM (generation-aware; ~48 MiB on v7x).
        cp_kwargs["vmem_limit_bytes"] = min(int(per_step_vmem * 1.25),
                                            (vmem_cap * 3) // 4)

    cost = pl.CostEstimate(
        flops=2 * B * Lq * Lk * (D + Dv),
        transcendentals=B * Lq * (Lk + 1),
        bytes_accessed=(q.size + k.size + v.size) * in_sz
        + (B * Lq * Dv + 2 * B * Lq * Lk) * out_sz,
    )

    out, attn, log_attn = pl.pallas_call(
        kernel,
        out_shape=out_shapes,
        grid_spec=grid_spec,
        compiler_params=pltpu.CompilerParams(**cp_kwargs),
        cost_estimate=cost,
    )(q, k, v)

    if transpose_attn:
        attn = jnp.swapaxes(attn, 1, 2)
        log_attn = jnp.swapaxes(log_attn, 1, 2)
    return out, attn, log_attn


def _reference(q, k, v, temperature):
    s = jnp.einsum("bqd,bkd->bqk", q, k) / temperature
    attn = jax.nn.softmax(s, axis=2)
    log_attn = jax.nn.log_softmax(s, axis=2)
    out = jnp.einsum("bqk,bkd->bqd", attn, v)
    return out, attn, log_attn


if __name__ == "__main__":
    key = jax.random.PRNGKey(0)
    kq, kk, kv = jax.random.split(key, 3)

    B, Lq, Lk, D = 2, 8, 8, 32
    temperature = float(jnp.sqrt(jnp.float32(D)))  # typical value used by callers

    q = jax.random.normal(kq, (B, Lq, D), dtype=jnp.float32)
    k = jax.random.normal(kk, (B, Lk, D), dtype=jnp.float32)
    v = jax.random.normal(kv, (B, Lk, D), dtype=jnp.float32)

    out, attn, log_attn = scaled_dot_product_attention(q, k, v, temperature)
    jax.block_until_ready((out, attn, log_attn))

    # correctness check against pure-JAX reference
    ref_out, ref_attn, ref_log_attn = _reference(q, k, v, temperature)
    assert jnp.allclose(out, ref_out, atol=1e-5, rtol=1e-5)
    assert jnp.allclose(attn, ref_attn, atol=1e-5, rtol=1e-5)
    assert jnp.allclose(log_attn, ref_log_attn, atol=1e-5, rtol=1e-5)

    print("KERNEL_OK")
</pallas_src>

<mosaic_0001>
module attributes {stable_mosaic.version = 11 : i64} {
  func.func @_sdpa_kernel(%arg0: i32, %arg1: i32, %arg2: memref<2x8x32xf32, #tpu.memory_space<vmem>>, %arg3: memref<2x8x32xf32, #tpu.memory_space<vmem>>, %arg4: memref<2x8x32xf32, #tpu.memory_space<vmem>>, %arg5: memref<2x8x32xf32, #tpu.memory_space<vmem>>, %arg6: memref<2x8x8xf32, #tpu.memory_space<vmem>>, %arg7: memref<2x8x8xf32, #tpu.memory_space<vmem>>) attributes {dimension_semantics = [#tpu.dimension_semantics<parallel>, #tpu.dimension_semantics<parallel>], iteration_bounds = array<i64: 1, 1>, scalar_prefetch = 0 : i64, scratch_operands = 0 : i64, tpu.core_type = #tpu.core_type<tc>, window_params = [{transform_indices = @transform_0, window_bounds = array<i64: 2, 8, 32>}, {transform_indices = @transform_1, window_bounds = array<i64: 2, 8, 32>}, {transform_indices = @transform_2, window_bounds = array<i64: 2, 8, 32>}, {transform_indices = @transform_3, window_bounds = array<i64: 2, 8, 32>}, {transform_indices = @transform_4, window_bounds = array<i64: 2, 8, 8>}, {transform_indices = @transform_5, window_bounds = array<i64: 2, 8, 8>}]} {
    %c0 = arith.constant 0 : index
    %c0_0 = arith.constant 0 : index
    %c0_1 = arith.constant 0 : index
    %0 = vector.load %arg2[%c0, %c0_0, %c0_1] : memref<2x8x32xf32, #tpu.memory_space<vmem>>, vector<2x8x32xf32>
    %c0_2 = arith.constant 0 : index
    %c0_3 = arith.constant 0 : index
    %c0_4 = arith.constant 0 : index
    %1 = vector.load %arg3[%c0_2, %c0_3, %c0_4] : memref<2x8x32xf32, #tpu.memory_space<vmem>>, vector<2x8x32xf32>
    %c0_5 = arith.constant 0 : index
    %c0_6 = arith.constant 0 : index
    %c0_7 = arith.constant 0 : index
    %2 = vector.load %arg4[%c0_5, %c0_6, %c0_7] : memref<2x8x32xf32, #tpu.memory_space<vmem>>, vector<2x8x32xf32>
    "tpu.trace_start"() <{level = 10 : i32, message = "bqd,bkd->bqk"}> : () -> ()
    %cst = arith.constant dense<0.000000e+00> : vector<2x8x8xf32>
    %3 = tpu.matmul %0, %1, %cst {dimension_numbers = #tpu.dot_dimension_numbers<[2], [2], [1], [1], [0, 0, 0, 1, 1, 1], [0], [0]>} : vector<2x8x32xf32>, vector<2x8x32xf32>, vector<2x8x8xf32> -> vector<2x8x8xf32>
    "tpu.trace_stop"() : () -> ()
    %cst_8 = arith.constant 0.176776692 : f32
    %4 = vector.broadcast %cst_8 : f32 to vector<2x8x8xf32>
    %5 = arith.mulf %3, %4 : vector<2x8x8xf32>
    %cst_9 = arith.constant dense<0xFF800000> : vector<2x8xf32>
    %6 = vector.multi_reduction <maximumf>, %5, %cst_9 [2] : vector<2x8x8xf32> to vector<2x8xf32>
    %7 = vector.shape_cast %6 : vector<2x8xf32> to vector<2x8x1xf32>
    %8 = vector.broadcast %7 : vector<2x8x1xf32> to vector<2x8x8xf32>
    %9 = arith.subf %5, %8 : vector<2x8x8xf32>
    %10 = math.exp %9 : vector<2x8x8xf32>
    %cst_10 = arith.constant dense<0.000000e+00> : vector<2x8xf32>
    %11 = vector.multi_reduction <add>, %10, %cst_10 [2] : vector<2x8x8xf32> to vector<2x8xf32>
    %12 = vector.shape_cast %11 : vector<2x8xf32> to vector<2x8x1xf32>
    %13 = tpu.reciprocal %12 : vector<2x8x1xf32> -> vector<2x8x1xf32>
    %14 = vector.broadcast %13 : vector<2x8x1xf32> to vector<2x8x8xf32>
    %15 = arith.mulf %10, %14 : vector<2x8x8xf32>
    %16 = math.log %12 : vector<2x8x1xf32>
    %17 = vector.broadcast %16 : vector<2x8x1xf32> to vector<2x8x8xf32>
    %18 = arith.subf %9, %17 : vector<2x8x8xf32>
    "tpu.trace_start"() <{level = 10 : i32, message = "bqk,bkd->bqd"}> : () -> ()
    %cst_11 = arith.constant dense<0.000000e+00> : vector<2x8x32xf32>
    %19 = tpu.matmul %15, %2, %cst_11 {dimension_numbers = #tpu.dot_dimension_numbers<[2], [1], [1], [2], [0, 0, 0, 1, 1, 2], [0], [0]>} : vector<2x8x8xf32>, vector<2x8x32xf32>, vector<2x8x32xf32> -> vector<2x8x32xf32>
    "tpu.trace_stop"() : () -> ()
    %c0_12 = arith.constant 0 : index
    %c0_13 = arith.constant 0 : index
    %c0_14 = arith.constant 0 : index
    %20 = vector.load %arg5[%c0_12, %c0_13, %c0_14] : memref<2x8x32xf32, #tpu.memory_space<vmem>>, vector<2x8x32xf32>
    tpu.vector_store %arg5[%c0_12, %c0_13, %c0_14], %19 {strides = array<i32>} : memref<2x8x32xf32, #tpu.memory_space<vmem>>, vector<2x8x32xf32>,
    %c0_15 = arith.constant 0 : index
    %c0_16 = arith.constant 0 : index
    %c0_17 = arith.constant 0 : index
    %21 = vector.load %arg6[%c0_15, %c0_16, %c0_17] : memref<2x8x8xf32, #tpu.memory_space<vmem>>, vector<2x8x8xf32>
    tpu.vector_store %arg6[%c0_15, %c0_16, %c0_17], %15 {strides = array<i32>} : memref<2x8x8xf32, #tpu.memory_space<vmem>>, vector<2x8x8xf32>,
    %c0_18 = arith.constant 0 : index
    %c0_19 = arith.constant 0 : index
    %c0_20 = arith.constant 0 : index
    %22 = vector.load %arg7[%c0_18, %c0_19, %c0_20] : memref<2x8x8xf32, #tpu.memory_space<vmem>>, vector<2x8x8xf32>
    tpu.vector_store %arg7[%c0_18, %c0_19, %c0_20], %18 {strides = array<i32>} : memref<2x8x8xf32, #tpu.memory_space<vmem>>, vector<2x8x8xf32>,
    return
  }
  func.func @transform_0(%arg0: i32, %arg1: i32) -> (i32, i32, i32) {
    %c0_i32 = arith.constant 0 : i32
    %c0_i32_0 = arith.constant 0 : i32
    return %arg0, %arg1, %c0_i32 : i32, i32, i32
  }
  func.func @transform_1(%arg0: i32, %arg1: i32) -> (i32, i32, i32) {
    %c0_i32 = arith.constant 0 : i32
    %c0_i32_0 = arith.constant 0 : i32
    %c0_i32_1 = arith.constant 0 : i32
    return %arg0, %c0_i32, %c0_i32_0 : i32, i32, i32
  }
  func.func @transform_2(%arg0: i32, %arg1: i32) -> (i32, i32, i32) {
    %c0_i32 = arith.constant 0 : i32
    %c0_i32_0 = arith.constant 0 : i32
    %c0_i32_1 = arith.constant 0 : i32
    return %arg0, %c0_i32, %c0_i32_0 : i32, i32, i32
  }
  func.func @transform_3(%arg0: i32, %arg1: i32) -> (i32, i32, i32) {
    %c0_i32 = arith.constant 0 : i32
    %c0_i32_0 = arith.constant 0 : i32
    return %arg0, %arg1, %c0_i32 : i32, i32, i32
  }
  func.func @transform_4(%arg0: i32, %arg1: i32) -> (i32, i32, i32) {
    %c0_i32 = arith.constant 0 : i32
    %c0_i32_0 = arith.constant 0 : i32
    return %arg0, %arg1, %c0_i32 : i32, i32, i32
  }
  func.func @transform_5(%arg0: i32, %arg1: i32) -> (i32, i32, i32) {
    %c0_i32 = arith.constant 0 : i32
    %c0_i32_0 = arith.constant 0 : i32
    return %arg0, %arg1, %c0_i32 : i32, i32, i32
  }
}

</mosaic_0001>

<llo_original>
// kernel: tpu_custom_call.1
$region0: #{tpu_custom_call.1}
  #allocation0 [shape = 'u32[]', space=smem, size = 0x4, offset = 0x4, fixed_abs, tag = 'smem constant byte address 0x4 - core index']
  #allocation1 [shape = 'u32[72,128]{1,0:T(1,128)}', space=vmem, size = 0x9000, scoped, tag = 'internal scratch']
  %s0 = inlined_call_operand.hbm [shape: f32[2,8,32], index: 0, kind: input, shape index: {}]
  %s1 = inlined_call_operand.hbm [shape: f32[2,8,32], index: 1, kind: input, shape index: {}]
  %s2 = inlined_call_operand.hbm [shape: f32[2,8,32], index: 2, kind: input, shape index: {}]
  %s3 = inlined_call_operand.hbm [shape: f32[2,8,32], index: 3, kind: output, shape index: {0}]
  %s4 = inlined_call_operand.hbm [shape: f32[2,8,8], index: 4, kind: output, shape index: {1}]
  %s5 = inlined_call_operand.hbm [shape: f32[2,8,8], index: 5, kind: output, shape index: {2}]
  %6 = xla_tuple %s3, %s4, %s5
  %s7 = sld [smem:[#allocation0]]
  $region50: #{tpu_custom_call.1} parent=0
    _
  %s9 = ssub.s32 1, %s7
  %s10 = scalar_select 0, %s9, %s7
  $region1: #{tpu_custom_call.1} parent=0
    #allocation2 [shape = 'u8[8192]{0}', space=vmem, size = 0x2000, scoped, tag = 'input window, operand 0, single buffered']
    #allocation3 [shape = 's32[1]{0}', space=sflag, size = 0x4, scoped, tag = 'scoped memory for tpu_custom_call.1']
    #allocation4 [shape = 's32[1]{0}', space=sflag, size = 0x4, scoped, tag = 'scoped memory for tpu_custom_call.1']
    #allocation5 [shape = 'u8[8192]{0}', space=vmem, size = 0x2000, scoped, tag = 'input window, operand 1, single buffered']
    #allocation6 [shape = 's32[1]{0}', space=sflag, size = 0x4, scoped, tag = 'scoped memory for tpu_custom_call.1']
    #allocation7 [shape = 'u8[8192]{0}', space=vmem, size = 0x2000, scoped, tag = 'input window, operand 2, single buffered']
    #allocation8 [shape = 'u8[8192]{0}', space=vmem, size = 0x2000, scoped, tag = 'output window, operand 0, single buffered']
    #allocation9 [shape = 'u8[8192]{0}', space=vmem, size = 0x2000, scoped, tag = 'output window, operand 1, single buffered']
    #allocation10 [shape = 's32[1]{0}', space=sflag, size = 0x4, scoped, tag = 'scoped memory for tpu_custom_call.1']
    #allocation11 [shape = 'u8[8192]{0}', space=vmem, size = 0x2000, scoped, tag = 'output window, operand 2, single buffered']
    %11 = vsyncpa [#allocation3], 0
    %12 = vsyncpa [#allocation6], 0
    %13 = vsyncpa [#allocation4], 0
    %14 = vsyncpa [#allocation10], 0
    // Predicated region
    $region2: #{tpu_custom_call.1} parent=1 // pred_check
      _
    $region3: #{tpu_custom_call.1} parent=1 // pred_check_branch
      %16 = sbr.rel (0) target = $region5
    $region4: #{tpu_custom_call.1} parent=1 // pred_region
      %18 = vsyncadd [#allocation3], 0
      %s19 = sshll.u32 %s0, 4
      %s20 = int_to_ptr.hbm [resolvable:$true] %s19
      %s21 = sshll.u32 [#allocation2], 4
      %s22 = int_to_ptr.vmem [resolvable:$true] %s21
      %27 = dma.hbm_to_vmem [thread:$0]  %s20, 256, %s22, [#allocation3], 128, 128, 8
    $region5: #{tpu_custom_call.1} parent=1 // pred_fallthru
      _
    // Predicated region
    $region6: #{tpu_custom_call.1} parent=1 // pred_check
      _
    $region7: #{tpu_custom_call.1} parent=1 // pred_check_branch
      %29 = sbr.rel (0) target = $region9
    $region8: #{tpu_custom_call.1} parent=1 // pred_region
      %31 = vsyncadd [#allocation6], 0
      %s32 = sshll.u32 %s1, 4
      %s33 = int_to_ptr.hbm [resolvable:$true] %s32
      %s34 = sshll.u32 [#allocation5], 4
      %s35 = int_to_ptr.vmem [resolvable:$true] %s34
      %40 = dma.hbm_to_vmem [thread:$0]  %s33, 256, %s35, [#allocation6], 128, 128, 8
    $region9: #{tpu_custom_call.1} parent=1 // pred_fallthru
      _
    // Predicated region
    $region10: #{tpu_custom_call.1} parent=1 // pred_check
      _
    $region11: #{tpu_custom_call.1} parent=1 // pred_check_branch
      %42 = sbr.rel (0) target = $region13
    $region12: #{tpu_custom_call.1} parent=1 // pred_region
      %44 = vsyncadd [#allocation6], 0
      %s45 = sshll.u32 %s2, 4
      %s46 = int_to_ptr.hbm [resolvable:$true] %s45
      %s47 = sshll.u32 [#allocation7], 4
      %s48 = int_to_ptr.vmem [resolvable:$true] %s47
      %53 = dma.hbm_to_vmem [thread:$0]  %s46, 256, %s48, [#allocation6], 128, 128, 8
    $region13: #{tpu_custom_call.1} parent=1 // pred_fallthru
      _
    // Predicated region
    $region14: #{tpu_custom_call.1} parent=1 // pred_check
      _
    $region15: #{tpu_custom_call.1} parent=1 // pred_check_branch
      %55 = sbr.rel (0) target = $region17
    $region16: #{tpu_custom_call.1} parent=1 // pred_region
      %57 = dma.done [#allocation3], 256
    $region17: #{tpu_custom_call.1} parent=1 // pred_fallthru
      _
    // Predicated region
    $region18: #{tpu_custom_call.1} parent=1 // pred_check
      _
    $region19: #{tpu_custom_call.1} parent=1 // pred_check_branch
      %59 = sbr.rel (0) target = $region21
    $region20: #{tpu_custom_call.1} parent=1 // pred_region
      %61 = dma.done [#allocation6], 256
    $region21: #{tpu_custom_call.1} parent=1 // pred_fallthru
      _
    // Predicated region
    $region22: #{tpu_custom_call.1} parent=1 // pred_check
      _
    $region23: #{tpu_custom_call.1} parent=1 // pred_check_branch
      %63 = sbr.rel (0) target = $region25
    $region24: #{tpu_custom_call.1} parent=1 // pred_region
      %65 = dma.done [#allocation6], 256
    $region25: #{tpu_custom_call.1} parent=1 // pred_fallthru
      _
    %v66 = vld [vmem:[#allocation2] sm:$0xff]
    %v67 = vld [vmem:[#allocation2 + $0x8] sm:$0xff]
    %v68 = vld [vmem:[#allocation5] sm:$0xff]
    %v69 = vld [vmem:[#allocation5 + $0x8] sm:$0xff]
    %v70 = vld [vmem:[#allocation7] sm:$0xff]
    %v71 = vld [vmem:[#allocation7 + $0x8] sm:$0xff]
    %vm72 = vcmask 261120
    %v74 = vsel %vm72, %v66, 0
    %v77 = vsel %vm72, %v68, 0
    %79 = vmatpush.xpose.msra.mxu0 0.0
    %80 = vmatpush.xpose.msra.mxu0 0.0
    %81 = vmatpush.xpose.msra.mxu0 0.0
    %82 = vmatpush.xpose.msra.mxu0 0.0
    %83 = vmatpush.xpose.msra.mxu0 0.0
    %84 = vmatpush.xpose.msra.mxu0 0.0
    %85 = vmatpush.xpose.msra.mxu0 0.0
    %86 = vmatpush.xpose.msra.mxu0 0.0
    %87 = vmatpush.xpose.msra.mxu0 0.0
    %88 = vmatpush.xpose.msra.mxu0 0.0
    %89 = vmatpush.xpose.msra.mxu0 0.0
    %90 = vmatpush.xpose.msra.mxu0 0.0
    %91 = vmatpush.xpose.msra.mxu0 0.0
    %92 = vmatpush.xpose.msra.mxu0 0.0
    %93 = vmatpush.xpose.msra.mxu0 0.0
    %94 = vmatpush.xpose.msra.mxu0 %v77
    %95 = vmatmul.f32.gmra.mxu0 %v74
    %v96 = vpop.f32.mrf.mxu0
    %v97 = vadd.f32 0.0, %v96
    %98 = vdwg.mxu0
    %v100 = vsel %vm72, %v67, 0
    %v103 = vsel %vm72, %v69, 0
    %105 = vmatpush.xpose.msra.mxu0 0.0
    %106 = vmatpush.xpose.msra.mxu0 0.0
    %107 = vmatpush.xpose.msra.mxu0 0.0
    %108 = vmatpush.xpose.msra.mxu0 0.0
    %109 = vmatpush.xpose.msra.mxu0 0.0
    %110 = vmatpush.xpose.msra.mxu0 0.0
    %111 = vmatpush.xpose.msra.mxu0 0.0
    %112 = vmatpush.xpose.msra.mxu0 0.0
    %113 = vmatpush.xpose.msra.mxu0 0.0
    %114 = vmatpush.xpose.msra.mxu0 0.0
    %115 = vmatpush.xpose.msra.mxu0 0.0
    %116 = vmatpush.xpose.msra.mxu0 0.0
    %117 = vmatpush.xpose.msra.mxu0 0.0
    %118 = vmatpush.xpose.msra.mxu0 0.0
    %119 = vmatpush.xpose.msra.mxu0 0.0
    %120 = vmatpush.xpose.msra.mxu0 %v103
    %121 = vmatmul.f32.gmra.mxu0 %v100
    %v122 = vpop.f32.mrf.mxu0
    %v123 = vadd.f32 0.0, %v122
    %124 = vdwg.mxu0
    %v125 = vmul.f32 %v97, 0.17677669
    %v126 = vmul.f32 %v123, 0.17677669
    %vm127 = vcmask 64512
    %v128 = vsel %vm127, %v125, -inf
    %129 = vmax.xlane.f32.xlu0 %v128
    %v130 = vpop.xlane.xlu0 %129
    %v131 = vsel %vm127, %v126, -inf
    %132 = vmax.xlane.f32.xlu0 %v131
    %v133 = vpop.xlane.xlu0 %132
    %v134 = vsub.f32 %v125, %v130
    %v135 = vsub.f32 %v126, %v133
    %v136 = vmul.f32 %v134, 1.442695
    %v137 = vpow.pop %v136
    %v138 = vmul.f32 %v135, 1.442695
    %v139 = vpow.pop %v138
    %v140 = vsel %vm127, %v137, 0.0
    %141 = vadd.xlane.f32.xlu0 %v140
    %v142 = vpop.xlane.xlu0 %141
    %v143 = vsel %vm127, %v139, 0.0
    %144 = vadd.xlane.f32.xlu0 %v143
    %v145 = vpop.xlane.xlu0 %144
    %v146 = vrcp.pop %v142
    %v147 = vmul.f32 %v142, %v146
    %v148 = vsub.f32 1.0, %v147
    %v149 = vmul.f32 %v146, %v148
    %v150 = vadd.f32 %v146, %v149
    %vm151 = vweird.f32 %v142
    %vm152 = vweird.f32 %v146
    %vm153 = vmor %vm151, %vm152
    %v154 = vsel %vm153, %v146, %v150
    %v155 = vand.u32 2147483647, %v142
    %vm156 = vcmp.eq.f32.partialorder %v155, 8.507059e+37
    %v157 = vand.u32 %v142, 2147483648
    %v158 = vor.u32 1.1754944e-38, %v157
    %v159 = vsel %vm156, %v158, %v154
    %v160 = vrcp.pop %v145
    %v161 = vmul.f32 %v145, %v160
    %v162 = vsub.f32 1.0, %v161
    %v163 = vmul.f32 %v160, %v162
    %v164 = vadd.f32 %v160, %v163
    %vm165 = vweird.f32 %v145
    %vm166 = vweird.f32 %v160
    %vm167 = vmor %vm165, %vm166
    %v168 = vsel %vm167, %v160, %v164
    %v169 = vand.u32 2147483647, %v145
    %vm170 = vcmp.eq.f32.partialorder %v169, 8.507059e+37
    %v171 = vand.u32 %v145, 2147483648
    %v172 = vor.u32 1.1754944e-38, %v171
    %v173 = vsel %vm170, %v172, %v168
    %v174 = vmul.f32 %v137, %v159
    %v175 = vmul.f32 %v139, %v173
    %v176 = vlog2.pop %v142
    %v177 = vmul.f32 %v176, 0.6931472
    %v178 = vlog2.pop %v145
    %v179 = vmul.f32 %v178, 0.6931472
    %v180 = vsub.f32 %v134, %v177
    %v181 = vsub.f32 %v135, %v179
    %v183 = vsel %vm127, %v174, 0
    %185 = vmatpush.msra.mxu0 0.0
    %186 = vmatpush.msra.mxu0 0.0
    %187 = vmatpush.msra.mxu0 0.0
    %188 = vmatpush.msra.mxu0 0.0
    %189 = vmatpush.msra.mxu0 0.0
    %190 = vmatpush.msra.mxu0 0.0
    %191 = vmatpush.msra.mxu0 0.0
    %192 = vmatpush.msra.mxu0 0.0
    %193 = vmatpush.msra.mxu0 0.0
    %194 = vmatpush.msra.mxu0 0.0
    %195 = vmatpush.msra.mxu0 0.0
    %196 = vmatpush.msra.mxu0 0.0
    %197 = vmatpush.msra.mxu0 0.0
    %198 = vmatpush.msra.mxu0 0.0
    %199 = vmatpush.msra.mxu0 0.0
    %200 = vmatpush.msra.mxu0 %v70
    %201 = vmatmul.f32.gmra.mxu0 %v183
    %v202 = vpop.f32.mrf.mxu0
    %v203 = vadd.f32 0.0, %v202
    %204 = vdwg.mxu0
    %v206 = vsel %vm127, %v175, 0
    %208 = vmatpush.msra.mxu0 0.0
    %209 = vmatpush.msra.mxu0 0.0
    %210 = vmatpush.msra.mxu0 0.0
    %211 = vmatpush.msra.mxu0 0.0
    %212 = vmatpush.msra.mxu0 0.0
    %213 = vmatpush.msra.mxu0 0.0
    %214 = vmatpush.msra.mxu0 0.0
    %215 = vmatpush.msra.mxu0 0.0
    %216 = vmatpush.msra.mxu0 0.0
    %217 = vmatpush.msra.mxu0 0.0
    %218 = vmatpush.msra.mxu0 0.0
    %219 = vmatpush.msra.mxu0 0.0
    %220 = vmatpush.msra.mxu0 0.0
    %221 = vmatpush.msra.mxu0 0.0
    %222 = vmatpush.msra.mxu0 0.0
    %223 = vmatpush.msra.mxu0 %v71
    %224 = vmatmul.f32.gmra.mxu0 %v206
    %v225 = vpop.f32.mrf.mxu0
    %v226 = vadd.f32 0.0, %v225
    %227 = vdwg.mxu0
    %228 = vst.msk [vmem:[#allocation8] sm:$0xff] %vm72, %v203
    %229 = vst.msk [vmem:[#allocation8 + $0x8] sm:$0xff] %vm72, %v226
    %230 = vst.msk [vmem:[#allocation9] sm:$0xff] %vm127, %v174
    %231 = vst.msk [vmem:[#allocation9 + $0x8] sm:$0xff] %vm127, %v175
    %232 = vst.msk [vmem:[#allocation11] sm:$0xff] %vm127, %v180
    %233 = vst.msk [vmem:[#allocation11 + $0x8] sm:$0xff] %vm127, %v181
    // Predicated region
    $region26: #{tpu_custom_call.1} parent=1 // pred_check
      _
    $region27: #{tpu_custom_call.1} parent=1 // pred_check_branch
      %235 = sbr.rel (0) target = $region29
    $region28: #{tpu_custom_call.1} parent=1 // pred_region
      %237 = vsyncadd [#allocation4], 0
      %s238 = sshll.u32 [#allocation8], 4
      %s239 = int_to_ptr.vmem [resolvable:$true] %s238
      %s240 = sshll.u32 %s3, 4
      %s241 = int_to_ptr.hbm [resolvable:$true] %s240
      %246 = dma.vmem_to_hbm [thread:$0]  %s239, 256, %s241, [#allocation4], 128, 128, 8
    $region29: #{tpu_custom_call.1} parent=1 // pred_fallthru
      _
    // Predicated region
    $region30: #{tpu_custom_call.1} parent=1 // pred_check
      _
    $region31: #{tpu_custom_call.1} parent=1 // pred_check_branch
      %248 = sbr.rel (0) target = $region33
    $region32: #{tpu_custom_call.1} parent=1 // pred_region
      %250 = vsyncadd [#allocation10], 0
      %s251 = sshll.u32 [#allocation9], 4
      %s252 = int_to_ptr.vmem [resolvable:$true] %s251
      %s253 = sshll.u32 %s4, 4
      %s254 = int_to_ptr.hbm [resolvable:$true] %s253
      %259 = dma.vmem_to_hbm [thread:$0]  %s252, 256, %s254, [#allocation10], 128, 128, 8
    $region33: #{tpu_custom_call.1} parent=1 // pred_fallthru
      _
    // Predicated region
    $region34: #{tpu_custom_call.1} parent=1 // pred_check
      _
    $region35: #{tpu_custom_call.1} parent=1 // pred_check_branch
      %261 = sbr.rel (0) target = $region37
    $region36: #{tpu_custom_call.1} parent=1 // pred_region
      %263 = vsyncadd [#allocation10], 0
      %s264 = sshll.u32 [#allocation11], 4
      %s265 = int_to_ptr.vmem [resolvable:$true] %s264
      %s266 = sshll.u32 %s5, 4
      %s267 = int_to_ptr.hbm [resolvable:$true] %s266
      %272 = dma.vmem_to_hbm [thread:$0]  %s265, 256, %s267, [#allocation10], 128, 128, 8
    $region37: #{tpu_custom_call.1} parent=1 // pred_fallthru
      _
    // Predicated region
    $region38: #{tpu_custom_call.1} parent=1 // pred_check
      _
    $region39: #{tpu_custom_call.1} parent=1 // pred_check_branch
      %274 = sbr.rel (0) target = $region41
    $region40: #{tpu_custom_call.1} parent=1 // pred_region
      %276 = dma.done [#allocation4], 256
    $region41: #{tpu_custom_call.1} parent=1 // pred_fallthru
      _
    // Predicated region
    $region42: #{tpu_custom_call.1} parent=1 // pred_check
      _
    $region43: #{tpu_custom_call.1} parent=1 // pred_check_branch
      %278 = sbr.rel (0) target = $region45
    $region44: #{tpu_custom_call.1} parent=1 // pred_region
      %280 = dma.done [#allocation10], 256
    $region45: #{tpu_custom_call.1} parent=1 // pred_fallthru
      _
    // Predicated region
    $region46: #{tpu_custom_call.1} parent=1 // pred_check
      _
    $region47: #{tpu_custom_call.1} parent=1 // pred_check_branch
      %282 = sbr.rel (0) target = $region49
    $region48: #{tpu_custom_call.1} parent=1 // pred_region
      %284 = dma.done [#allocation10], 256
    $region49: #{tpu_custom_call.1} parent=1 // pred_fallthru
      _
    %285 = vsyncpa [#allocation3], 1
    %286 = vsyncpa [#allocation6], 1
    %287 = vsyncpa [#allocation4], 1
    %288 = vsyncpa [#allocation10], 1

</llo_original>
